<compile_context>
chip_gen: v5e
topology: v5e:2x2
jax: 0.10.0
libtpu: 0.0.40
codegen_flags: <defaults>
</compile_context>

<pallas_src>
import functools

import jax
import jax.numpy as jnp
from jax.experimental import pallas as pl
from jax.experimental.pallas import tpu as pltpu

LANE = 128          # lane width (last-dim vreg tiling unit)
SUBLANE = 8         # sublane count (second-to-last-dim tiling unit)
MAX_BLOCK_B = 4096  # batch rows per grid step (2-4K clears the ~0.35us/step floor)
MIN_SPLIT_B = 512   # above this, force >=2 grid steps so both v7x TCs get work


def _round_up(n: int, m: int) -> int:
    return ((n + m - 1) // m) * m


def classifier_kernel(x_ref, w1_ref, b1_ref, w2_ref, b2_ref, o_ref):
    # x arrives f32 (single HBM read); cast to bf16 on the VPU right before the
    # MXU -- replaces the wrapper-side cast pass.
    x = x_ref[...].astype(jnp.bfloat16)
    # Layer 1: bf16 operands on the MXU, f32 accumulation.
    h = jnp.dot(x, w1_ref[...], preferred_element_type=jnp.float32)
    # Bias + ReLU in f32 on the VPU (v5e has no bf16 VPU datapath).
    h = jnp.maximum(h + b1_ref[...], 0.0)
    # Layer 2: MXU again, against the lane-padded (hidden, 128) bf16 weight.
    logits = jnp.dot(h.astype(jnp.bfloat16), w2_ref[...],
                     preferred_element_type=jnp.float32)
    # Drop the pad columns in-register and store bf16: only (tb, n_classes)
    # leaves the kernel -- no wide f32 writeback, no post-kernel slice.
    nc = o_ref.shape[-1]
    o_ref[...] = (logits[:, :nc] + b2_ref[...]).astype(o_ref.dtype)


def init_classifier_params(w1, b1, w2, b2):
    """One-time parameter preprocessing (hoisted out of the per-call path).

    w1: [D_IN, HIDDEN], b1: [HIDDEN], w2: [HIDDEN, N_CLASSES], b2: [N_CLASSES]
    (weights stored [in, out], transpose of nn.Linear's [out, in]).
    Returns bf16 weights (W2 zero-padded to 128 lanes) and f32 row-vector biases.
    """
    d_in, hidden = w1.shape
    n_classes = w2.shape[1]
    n_pad = _round_up(n_classes, LANE)
    w2p = jnp.zeros((hidden, n_pad), jnp.bfloat16).at[:, :n_classes].set(
        w2.astype(jnp.bfloat16))
    return (w1.astype(jnp.bfloat16),
            b1.reshape(1, hidden).astype(jnp.float32),
            w2p,
            b2.reshape(1, n_classes).astype(jnp.float32))


@functools.partial(jax.jit, static_argnames=("block_b",))
def classifier_forward(x, w1b, b1r, w2b, b2r, *, block_b: int = MAX_BLOCK_B):
    """Fused Linear -> ReLU -> Linear head.

    x:   [B, D_IN] float32 (cast to bf16 inside the kernel)
    w1b: [D_IN, HIDDEN] bf16        b1r: [1, HIDDEN] f32
    w2b: [HIDDEN, 128] bf16 (padded) b2r: [1, N_CLASSES] f32
    returns bf16 logits [B, N_CLASSES] (cast to f32 outside if needed).
    """
    B, d_in = x.shape
    hidden = w1b.shape[1]
    n_pad = w2b.shape[1]
    n_classes = b2r.shape[1]

    # --- batch tiling: no wrapper padding; Pallas masks the ragged last block.
    align = 16 if B >= 16 else SUBLANE          # 16 keeps bf16 sublane packing clean
    tb = min(block_b, _round_up(B, align))
    if B >= MIN_SPLIT_B and pl.cdiv(B, tb) == 1:
        # Keep >=2 grid steps so v7x's two TensorCores both stream batch tiles.
        tb = _round_up(pl.cdiv(B, 2), align)
    grid = (pl.cdiv(B, tb),)

    return pl.pallas_call(
        classifier_kernel,
        out_shape=jax.ShapeDtypeStruct((B, n_classes), jnp.bfloat16),
        grid_spec=pltpu.PrefetchScalarGridSpec(
            num_scalar_prefetch=0,
            grid=grid,
            in_specs=[
                pl.BlockSpec((tb, d_in), lambda i: (i, 0)),       # x: batch-tiled
                pl.BlockSpec((d_in, hidden), lambda i: (0, 0)),   # W1: VMEM-resident
                pl.BlockSpec((1, hidden), lambda i: (0, 0)),      # b1: resident
                pl.BlockSpec((hidden, n_pad), lambda i: (0, 0)),  # W2 (lane-padded): resident
                pl.BlockSpec((1, n_classes), lambda i: (0, 0)),   # b2: resident
            ],
            out_specs=pl.BlockSpec((tb, n_classes), lambda i: (i, 0)),
        ),
        compiler_params=pltpu.CompilerParams(
            # Batch tiles are independent -> megacore-shard them on v7x.
            dimension_semantics=("parallel",),
        ),
    )(x, w1b, b1r, w2b, b2r)


def _reference(x, w1, b1, w2, b2):
    """Pure-JAX reference mirroring the kernel's bf16-operand / f32-accum path.

    NOTE: tolerances in __main__ therefore test the kernel against its own
    stated numerics (bf16 operands + bf16 output rounding, ~0.4% relative),
    not a full-f32 PyTorch reference.
    """
    xb = x.astype(jnp.bfloat16).astype(jnp.float32)
    w1b = w1.astype(jnp.bfloat16).astype(jnp.float32)
    w2b = w2.astype(jnp.bfloat16).astype(jnp.float32)
    h = jnp.maximum(xb @ w1b + b1[None, :], 0.0)
    hb = h.astype(jnp.bfloat16).astype(jnp.float32)
    return hb @ w2b + b2[None, :]


if __name__ == "__main__":
    # Small shapes consistent with a 2-class classifier head.
    D_IN, HIDDEN, N_CLASSES = 32, 64, 2

    key = jax.random.PRNGKey(0)
    kx, kw1, kb1, kw2, kb2, kx2 = jax.random.split(key, 6)

    # Deterministic synthetic parameters (nn.Linear-shaped, stored [in, out]).
    w1 = jax.random.normal(kw1, (D_IN, HIDDEN), dtype=jnp.float32) * 0.1
    b1 = jax.random.normal(kb1, (HIDDEN,), dtype=jnp.float32) * 0.1
    w2 = jax.random.normal(kw2, (HIDDEN, N_CLASSES), dtype=jnp.float32) * 0.1
    b2 = jax.random.normal(kb2, (N_CLASSES,), dtype=jnp.float32) * 0.1

    # One-time weight preprocessing (bf16 cast + lane padding), hoisted out of
    # the per-call forward path.
    params = init_classifier_params(w1, b1, w2, b2)

    # Case 1: tiny batch -> single exact tile.
    B1 = 8
    x1 = jax.random.normal(kx, (B1, D_IN), dtype=jnp.float32)
    out1 = jax.block_until_ready(classifier_forward(x1, *params))
    ref1 = _reference(x1, w1, b1, w2, b2)
    assert out1.shape == (B1, N_CLASSES) and out1.dtype == jnp.bfloat16
    assert jnp.allclose(out1.astype(jnp.float32), ref1, atol=2e-2, rtol=2e-2)

    # Case 2: batched path -> 2 grid steps (v7x megacore) + masked ragged tail.
    B2 = 1000
    x2 = jax.random.normal(kx2, (B2, D_IN), dtype=jnp.float32)
    out2 = jax.block_until_ready(classifier_forward(x2, *params))
    ref2 = _reference(x2, w1, b1, w2, b2)
    assert out2.shape == (B2, N_CLASSES) and out2.dtype == jnp.bfloat16
    assert jnp.allclose(out2.astype(jnp.float32), ref2, atol=2e-2, rtol=2e-2)

    # TODO(synk): predict/predict_proba iterate a host-side DataLoader and apply
    # softmax/argmax; that host loop plus trivial jnp glue on the returned
    # logits has no kernel equivalent.
    print("KERNEL_OK")
</pallas_src>

<mosaic_0001>
module attributes {stable_mosaic.version = 11 : i64} {
  func.func @classifier_kernel(%arg0: i32, %arg1: memref<8x32xf32, #tpu.memory_space<vmem>>, %arg2: memref<32x64xbf16, #tpu.memory_space<vmem>>, %arg3: memref<1x64xf32, #tpu.memory_space<vmem>>, %arg4: memref<64x128xbf16, #tpu.memory_space<vmem>>, %arg5: memref<1x2xf32, #tpu.memory_space<vmem>>, %arg6: memref<8x2xbf16, #tpu.memory_space<vmem>>) attributes {dimension_semantics = [#tpu.dimension_semantics<parallel>], iteration_bounds = array<i64: 1>, scalar_prefetch = 0 : i64, scratch_operands = 0 : i64, tpu.core_type = #tpu.core_type<tc>, window_params = [{transform_indices = @transform_0, window_bounds = array<i64: 8, 32>}, {pipeline_mode = #tpu.pipeline_mode<synchronous>, transform_indices = @transform_1, window_bounds = array<i64: 32, 64>}, {pipeline_mode = #tpu.pipeline_mode<synchronous>, transform_indices = @transform_2, window_bounds = array<i64: 1, 64>}, {pipeline_mode = #tpu.pipeline_mode<synchronous>, transform_indices = @transform_3, window_bounds = array<i64: 64, 128>}, {pipeline_mode = #tpu.pipeline_mode<synchronous>, transform_indices = @transform_4, window_bounds = array<i64: 1, 2>}, {transform_indices = @transform_5, window_bounds = array<i64: 8, 2>}]} {
    %c0 = arith.constant 0 : index
    %c0_0 = arith.constant 0 : index
    %0 = vector.load %arg1[%c0, %c0_0] : memref<8x32xf32, #tpu.memory_space<vmem>>, vector<8x32xf32>
    %1 = arith.truncf %0 : vector<8x32xf32> to vector<8x32xbf16>
    %c0_1 = arith.constant 0 : index
    %c0_2 = arith.constant 0 : index
    %2 = vector.load %arg2[%c0_1, %c0_2] : memref<32x64xbf16, #tpu.memory_space<vmem>>, vector<32x64xbf16>
    %cst = arith.constant dense<0.000000e+00> : vector<8x64xf32>
    %3 = tpu.matmul %1, %2, %cst {dimension_numbers = #tpu.dot_dimension_numbers<[1], [0], [0], [1], [0, 0, 1, 1], [], []>} : vector<8x32xbf16>, vector<32x64xbf16>, vector<8x64xf32> -> vector<8x64xf32>
    %c0_3 = arith.constant 0 : index
    %c0_4 = arith.constant 0 : index
    %4 = vector.load %arg3[%c0_3, %c0_4] : memref<1x64xf32, #tpu.memory_space<vmem>>, vector<1x64xf32>
    %5 = vector.broadcast %4 : vector<1x64xf32> to vector<8x64xf32>
    %6 = arith.addf %3, %5 : vector<8x64xf32>
    %cst_5 = arith.constant 0.000000e+00 : f32
    %7 = vector.broadcast %cst_5 : f32 to vector<8x64xf32>
    %8 = arith.maximumf %6, %7 : vector<8x64xf32>
    %9 = arith.truncf %8 : vector<8x64xf32> to vector<8x64xbf16>
    %c0_6 = arith.constant 0 : index
    %c0_7 = arith.constant 0 : index
    %10 = vector.load %arg4[%c0_6, %c0_7] : memref<64x128xbf16, #tpu.memory_space<vmem>>, vector<64x128xbf16>
    %cst_8 = arith.constant dense<0.000000e+00> : vector<8x128xf32>
    %11 = tpu.matmul %9, %10, %cst_8 {dimension_numbers = #tpu.dot_dimension_numbers<[1], [0], [0], [1], [0, 0, 1, 1], [], []>} : vector<8x64xbf16>, vector<64x128xbf16>, vector<8x128xf32> -> vector<8x128xf32>
    %12 = vector.extract_strided_slice %11 {offsets = [0, 0], sizes = [8, 2], strides = [1, 1]} : vector<8x128xf32> to vector<8x2xf32>
    %c0_9 = arith.constant 0 : index
    %c0_10 = arith.constant 0 : index
    %13 = vector.load %arg5[%c0_9, %c0_10] : memref<1x2xf32, #tpu.memory_space<vmem>>, vector<1x2xf32>
    %14 = vector.broadcast %13 : vector<1x2xf32> to vector<8x2xf32>
    %15 = arith.addf %12, %14 : vector<8x2xf32>
    %16 = arith.truncf %15 : vector<8x2xf32> to vector<8x2xbf16>
    %c0_11 = arith.constant 0 : index
    %c0_12 = arith.constant 0 : index
    %17 = vector.load %arg6[%c0_11, %c0_12] : memref<8x2xbf16, #tpu.memory_space<vmem>>, vector<8x2xbf16>
    tpu.vector_store %arg6[%c0_11, %c0_12], %16 {strides = array<i32>} : memref<8x2xbf16, #tpu.memory_space<vmem>>, vector<8x2xbf16>,
    return
  }
  func.func @transform_0(%arg0: i32) -> (i32, i32) {
    %c0_i32 = arith.constant 0 : i32
    %c0_i32_0 = arith.constant 0 : i32
    return %arg0, %c0_i32 : i32, i32
  }
  func.func @transform_1(%arg0: i32) -> (i32, i32) {
    %c0_i32 = arith.constant 0 : i32
    %c0_i32_0 = arith.constant 0 : i32
    %c0_i32_1 = arith.constant 0 : i32
    return %c0_i32, %c0_i32_0 : i32, i32
  }
  func.func @transform_2(%arg0: i32) -> (i32, i32) {
    %c0_i32 = arith.constant 0 : i32
    %c0_i32_0 = arith.constant 0 : i32
    %c0_i32_1 = arith.constant 0 : i32
    return %c0_i32, %c0_i32_0 : i32, i32
  }
  func.func @transform_3(%arg0: i32) -> (i32, i32) {
    %c0_i32 = arith.constant 0 : i32
    %c0_i32_0 = arith.constant 0 : i32
    %c0_i32_1 = arith.constant 0 : i32
    return %c0_i32, %c0_i32_0 : i32, i32
  }
  func.func @transform_4(%arg0: i32) -> (i32, i32) {
    %c0_i32 = arith.constant 0 : i32
    %c0_i32_0 = arith.constant 0 : i32
    %c0_i32_1 = arith.constant 0 : i32
    return %c0_i32, %c0_i32_0 : i32, i32
  }
  func.func @transform_5(%arg0: i32) -> (i32, i32) {
    %c0_i32 = arith.constant 0 : i32
    %c0_i32_0 = arith.constant 0 : i32
    return %arg0, %c0_i32 : i32, i32
  }
}

</mosaic_0001>

<llo_original>
// kernel: classifier_forward.1
$region0: #{classifier_forward.1}
  #allocation0 [shape = 'u32[]', space=smem, size = 0x4, offset = 0x4, fixed_abs, tag = 'smem constant byte address 0x4 - core index']
  #allocation1 [shape = 'u32[72,128]{1,0:T(1,128)}', space=vmem, size = 0x9000, scoped, tag = 'internal scratch']
  %s0 = inlined_call_operand.hbm [shape: f32[8,32], index: 0, kind: input, shape index: {}]
  %s1 = inlined_call_operand.hbm [shape: bf16[32,64], index: 1, kind: input, shape index: {}]
  %s2 = inlined_call_operand.vmem [shape: f32[1,64], index: 2, kind: input, shape index: {}]
  %s3 = inlined_call_operand.hbm [shape: bf16[64,128], index: 3, kind: input, shape index: {}]
  %s4 = inlined_call_operand.vmem [shape: f32[1,2], index: 4, kind: input, shape index: {}]
  %s5 = inlined_call_operand.vmem [shape: bf16[8,2], index: 5, kind: output, shape index: {}]
  %s6 = sld [smem:[#allocation0]]
  $region42: #{classifier_forward.1} parent=0
    _
  %s8 = ssub.s32 1, %s6
  %s9 = scalar_select 0, %s8, %s6
  $region1: #{classifier_forward.1} parent=0
    #allocation2 [shape = 'u8[4096]{0}', space=vmem, size = 0x1000, scoped, tag = 'input window, operand 0, single buffered']
    #allocation3 [shape = 's32[1]{0}', space=sflag, size = 0x4, scoped, tag = 'scoped memory for classifier_forward.1']
    #allocation4 [shape = 'u8[8192]{0}', space=vmem, size = 0x2000, scoped, tag = 'input window, operand 1, single buffered']
    #allocation5 [shape = 's32[1]{0}', space=sflag, size = 0x4, scoped, tag = 'scoped memory for classifier_forward.1']
    #allocation6 [shape = 'u8[16384]{0}', space=vmem, size = 0x4000, scoped, tag = 'input window, operand 3, single buffered']
    %10 = vsyncpa [#allocation3], 0
    %11 = vsyncpa [#allocation5], 0
    // Predicated region
    $region2: #{classifier_forward.1} parent=1 // pred_check
      _
    $region3: #{classifier_forward.1} parent=1 // pred_check_branch
      %13 = sbr.rel (0) target = $region5
    $region4: #{classifier_forward.1} parent=1 // pred_region
      %15 = vsyncadd [#allocation3], 0
      %s17 = sshll.u32 %s0, 4
      %s18 = int_to_ptr.hbm [resolvable:$true] %s17
      %s19 = sshll.u32 [#allocation2], 4
      %s20 = int_to_ptr.vmem [resolvable:$true] %s19
      %22 = dma.hbm_to_vmem [thread:$0]  %s18, 128, %s20, [#allocation3]
    $region5: #{classifier_forward.1} parent=1 // pred_fallthru
      _
    // Predicated region
    $region6: #{classifier_forward.1} parent=1 // pred_check
      _
    $region7: #{classifier_forward.1} parent=1 // pred_check_branch
      %24 = sbr.rel (0) target = $region9
    $region8: #{classifier_forward.1} parent=1 // pred_region
      %26 = vsyncadd [#allocation5], 0
      %s27 = sshll.u32 %s1, 4
      %s28 = int_to_ptr.hbm [resolvable:$true] %s27
      %s29 = sshll.u32 [#allocation4], 4
      %s30 = int_to_ptr.vmem [resolvable:$true] %s29
      %35 = dma.hbm_to_vmem [thread:$0]  %s28, 256, %s30, [#allocation5], 64, 64, 4
    $region9: #{classifier_forward.1} parent=1 // pred_fallthru
      _
    // Predicated region
    $region10: #{classifier_forward.1} parent=1 // pred_check
      _
    $region11: #{classifier_forward.1} parent=1 // pred_check_branch
      %37 = sbr.rel (0) target = $region13
    $region12: #{classifier_forward.1} parent=1 // pred_region
      _
    $region13: #{classifier_forward.1} parent=1 // pred_fallthru
      _
    // Predicated region
    $region14: #{classifier_forward.1} parent=1 // pred_check
      _
    $region15: #{classifier_forward.1} parent=1 // pred_check_branch
      %39 = sbr.rel (0) target = $region17
    $region16: #{classifier_forward.1} parent=1 // pred_region
      %41 = vsyncadd [#allocation5], 0
      %s42 = sshll.u32 %s3, 4
      %s43 = int_to_ptr.hbm [resolvable:$true] %s42
      %s44 = sshll.u32 [#allocation6], 4
      %s45 = int_to_ptr.vmem [resolvable:$true] %s44
      %50 = dma.hbm_to_vmem [thread:$0]  %s43, 512, %s45, [#allocation5], 64, 64, 4
    $region17: #{classifier_forward.1} parent=1 // pred_fallthru
      _
    // Predicated region
    $region18: #{classifier_forward.1} parent=1 // pred_check
      _
    $region19: #{classifier_forward.1} parent=1 // pred_check_branch
      %52 = sbr.rel (0) target = $region21
    $region20: #{classifier_forward.1} parent=1 // pred_region
      _
    $region21: #{classifier_forward.1} parent=1 // pred_fallthru
      _
    // Predicated region
    $region22: #{classifier_forward.1} parent=1 // pred_check
      _
    $region23: #{classifier_forward.1} parent=1 // pred_check_branch
      %54 = sbr.rel (0) target = $region25
    $region24: #{classifier_forward.1} parent=1 // pred_region
      %56 = dma.done [#allocation3], 128
    $region25: #{classifier_forward.1} parent=1 // pred_fallthru
      _
    // Predicated region
    $region26: #{classifier_forward.1} parent=1 // pred_check
      _
    $region27: #{classifier_forward.1} parent=1 // pred_check_branch
      %58 = sbr.rel (0) target = $region29
    $region28: #{classifier_forward.1} parent=1 // pred_region
      %60 = dma.done [#allocation5], 256
    $region29: #{classifier_forward.1} parent=1 // pred_fallthru
      _
    // Predicated region
    $region30: #{classifier_forward.1} parent=1 // pred_check
      _
    $region31: #{classifier_forward.1} parent=1 // pred_check_branch
      %62 = sbr.rel (0) target = $region33
    $region32: #{classifier_forward.1} parent=1 // pred_region
      %64 = dma.done [#allocation5], 512
    $region33: #{classifier_forward.1} parent=1 // pred_fallthru
      _
    %v66 = vld [vmem:[#allocation2] sm:$0xff]
    %v67 = vpack.c.bf16 %v66, %v66
    %v68 = vld [vmem:[#allocation4] sm:$0xf]
    %v69 = vld [vmem:[#allocation4 + $0x4] sm:$0xf]
    %v70 = vld [vmem:[#allocation4 + $0x8] sm:$0xf]
    %v71 = vld [vmem:[#allocation4 + $0xc] sm:$0xf]
    %v72 = vld [vmem:[%s2] sm:$0x1]
    %v74 = vperm.slane %v72, 0
    %v80 = vunpack.c.l.b16 %v68
    %v81 = vunpack.c.l.b16 %v69
    %v82 = vunpack.c.l.b16 %v70
    %v83 = vunpack.c.l.b16 %v71
    %v84 = vpack.c.b16 %v81, %v80
    %v85 = vpack.c.b16 %v83, %v82
    %vm88 = vcmask 261120
    %v90 = vsel %vm88, %v67, 0
    %92 = vmatpush.bf16.msra.mxu0 0
    %93 = vmatpush.bf16.msra.mxu0 0
    %94 = vmatpush.bf16.msra.mxu0 0
    %95 = vmatpush.bf16.msra.mxu0 0
    %96 = vmatpush.bf16.msra.mxu0 0
    %97 = vmatpush.bf16.msra.mxu0 0
    %98 = vmatpush.bf16.msra.mxu0 %v85
    %99 = vmatpush.bf16.msra.mxu0 %v84
    %100 = vmatmul.bf16.gmra.mxu0 %v90
    %v101 = vpop.f32.mrf.mxu0
    %v102 = vadd.f32 %v74, %v101
    %v103 = vpop.f32.mrf.mxu0
    %104 = vdwg.mxu0
    %v105 = vmax.f32 %v102, 0.0
    %v106 = vpack.c.bf16 %v105, %v105
    %v107 = vld [vmem:[#allocation6] sm:$0xf]
    %v108 = vld [vmem:[#allocation6 + $0x4] sm:$0xf]
    %v109 = vld [vmem:[#allocation6 + $0x8] sm:$0xf]
    %v110 = vld [vmem:[#allocation6 + $0xc] sm:$0xf]
    %v111 = vld [vmem:[#allocation6 + $0x10] sm:$0xf]
    %v112 = vld [vmem:[#allocation6 + $0x14] sm:$0xf]
    %v113 = vld [vmem:[#allocation6 + $0x18] sm:$0xf]
    %v114 = vld [vmem:[#allocation6 + $0x1c] sm:$0xf]
    %v123 = vunpack.c.l.b16 %v107
    %v124 = vunpack.c.l.b16 %v108
    %v125 = vunpack.c.l.b16 %v109
    %v126 = vunpack.c.l.b16 %v110
    %v127 = vunpack.c.l.b16 %v111
    %v128 = vunpack.c.l.b16 %v112
    %v129 = vunpack.c.l.b16 %v113
    %v130 = vunpack.c.l.b16 %v114
    %v131 = vpack.c.b16 %v124, %v123
    %v132 = vpack.c.b16 %v126, %v125
    %v133 = vpack.c.b16 %v128, %v127
    %v134 = vpack.c.b16 %v130, %v129
    %vm139 = vcmask 523264
    %v141 = vsel %vm139, %v106, 0
    %143 = vmatpush.bf16.msra.mxu0 0
    %144 = vmatpush.bf16.msra.mxu0 0
    %145 = vmatpush.bf16.msra.mxu0 0
    %146 = vmatpush.bf16.msra.mxu0 0
    %147 = vmatpush.bf16.msra.mxu0 %v134
    %148 = vmatpush.bf16.msra.mxu0 %v133
    %149 = vmatpush.bf16.msra.mxu0 %v132
    %150 = vmatpush.bf16.msra.mxu0 %v131
    %151 = vmatmul.bf16.gmra.mxu0 %v141
    %v152 = vpop.f32.mrf.mxu0
    %v153 = vadd.f32 0.0, %v152
    %v154 = vpop.f32.mrf.mxu0
    %155 = vdwg.mxu0
    %v156 = vld [vmem:[%s4] sm:$0x1]
    %v158 = vperm.slane %v156, 0
    %v160 = vadd.f32 %v153, %v158
    %v161 = vpack.c.bf16 %v160, %v160
    %vm162 = vcmask 11264
    %163 = vst.msk [vmem:[%s5] sm:$0xf] %vm162, %v161
    // Predicated region
    $region34: #{classifier_forward.1} parent=1 // pred_check
      _
    $region35: #{classifier_forward.1} parent=1 // pred_check_branch
      %165 = sbr.rel (0) target = $region37
    $region36: #{classifier_forward.1} parent=1 // pred_region
      _
    $region37: #{classifier_forward.1} parent=1 // pred_fallthru
      _
    // Predicated region
    $region38: #{classifier_forward.1} parent=1 // pred_check
      _
    $region39: #{classifier_forward.1} parent=1 // pred_check_branch
      %167 = sbr.rel (0) target = $region41
    $region40: #{classifier_forward.1} parent=1 // pred_region
      _
    $region41: #{classifier_forward.1} parent=1 // pred_fallthru
      _
    %168 = vsyncpa [#allocation3], 1
    %169 = vsyncpa [#allocation5], 1

</llo_original>
